<compile_context>
chip_gen: v6e
topology: v6e:2x2x1
jax: 0.10.0
libtpu: 0.0.40
codegen_flags: <defaults>
</compile_context>

<pallas_src>
from functools import partial

import jax
import jax.numpy as jnp
from jax.experimental import pallas as pl
from jax.experimental.pallas import tpu as pltpu


# ----------------------------------------------------------------------------
# Pallas kernel: fused 3-branch strided conv1d + bias + ReLU for one time tile.
# ----------------------------------------------------------------------------
def _encoder_block_kernel(cur_ref, nxt_ref, w_ref, b_ref, out_ref,
                          win_ref, taps_ref, *, num_shifts, stride, tile_t):
    # cur_ref / nxt_ref : (stride, tile_t)  phase-major signal frames, time on lanes
    # w_ref             : (3C, Q*stride)    fused block-structured conv weights
    # b_ref             : (3C, 1)           fused bias
    # out_ref           : (3C, tile_t)      NCT output tile (channels x time)
    # win_ref           : (stride, 2*tile_t)   scratch: current tile + halo tile
    # taps_ref          : (Q*stride, tile_t)   scratch: in-VMEM "im2col" tap matrix

    # Stitch the current tile and the next (halo) tile into one window.
    win_ref[:, :tile_t] = cur_ref[...]
    win_ref[:, tile_t:] = nxt_ref[...]

    # Assemble the tap matrix in VMEM (this replaces the HBM im2col):
    #   taps[q*stride + p, t] = x_pad[(t0 + t + q)*stride + p]
    #                         = x_pad[(t0 + t)*stride + (q*stride + p)]
    # i.e. row j holds tap j of every output position of this tile.
    for q in range(num_shifts):
        taps_ref[q * stride:(q + 1) * stride, :] = win_ref[:, q:q + tile_t]

    # Single fused MXU matmul for all three conv branches (f32 accumulation),
    # then bias + ReLU, written straight out in channels-x-time layout.
    y = jnp.dot(w_ref[...], taps_ref[...], preferred_element_type=jnp.float32)
    out_ref[...] = jnp.maximum(y + b_ref[...], 0.0)


# ----------------------------------------------------------------------------
# Wrapper: padding / frame layout / weight fusion (cheap, done once) + pallas_call.
# ----------------------------------------------------------------------------
def encoder_block_forward(x, params, k_short, k_middle, k_long, *, tile_t=512):
    """x: (B, 1, T) float32.  Returns (X, X1, X2, X3) in PyTorch NCT layout."""
    w1, b1, w2, b2, w3, b3 = params
    B, _, T = x.shape
    C = w1.shape[0]
    stride = k_short // 2
    left_pad = k_short - 1

    # Output time length (identical for all three branches by construction).
    t_out = (T + 2 * left_pad - k_short) // stride + 1

    # Tap j of output t reads x_pad[t*stride + j]:
    #   short  branch: j in [0, k_short)
    #   middle branch: j in [left_pad, left_pad + k_middle)
    #   long   branch: j in [left_pad, left_pad + k_long)
    num_shifts = -(-(left_pad + k_long) // stride)       # Q = ceil((pad+K_l)/stride)
    qs = num_shifts * stride

    assert tile_t % 128 == 0, "tile_t must be a multiple of 128 (lane axis)"
    assert tile_t >= num_shifts, "tile_t too small for the conv halo"

    n_tiles = -(-t_out // tile_t)
    f_total = (n_tiles + 1) * tile_t          # frames incl. one extra halo tile
    l_total = f_total * stride                # padded signal length

    # Single zero-padded signal shared by all three branches.
    x2d = x[:, 0, :]
    xp = jnp.pad(x2d, ((0, 0), (left_pad, l_total - left_pad - T)))

    # Phase-major frames: frames[b, p, f] = xp[b, f*stride + p]
    # -> frame/time index lives on the 128-lane axis (dense loads in the kernel).
    frames = xp.reshape(B, f_total, stride).transpose(0, 2, 1)

    # One block-structured weight: each branch occupies its own channel band and
    # its own tap-column window.  Built once in the wrapper, resident in VMEM.
    w_all = jnp.zeros((3 * C, qs), jnp.float32)
    w_all = w_all.at[:C, :k_short].set(w1.astype(jnp.float32))
    w_all = w_all.at[C:2 * C, left_pad:left_pad + k_middle].set(w2.astype(jnp.float32))
    w_all = w_all.at[2 * C:, left_pad:left_pad + k_long].set(w3.astype(jnp.float32))
    b_all = jnp.concatenate([b1, b2, b3]).reshape(3 * C, 1).astype(jnp.float32)

    kernel = partial(_encoder_block_kernel,
                     num_shifts=num_shifts, stride=stride, tile_t=tile_t)

    x_padded = pl.pallas_call(
        kernel,
        out_shape=jax.ShapeDtypeStruct((B, 3 * C, n_tiles * tile_t), jnp.float32),
        grid=(B, n_tiles),
        in_specs=[
            # current time tile of frames
            pl.BlockSpec((None, stride, tile_t), lambda b, i: (b, 0, i)),
            # next time tile (halo) of the same array
            pl.BlockSpec((None, stride, tile_t), lambda b, i: (b, 0, i + 1)),
            # fused weights / bias: constant block index -> fetched once, stays in VMEM
            pl.BlockSpec((3 * C, qs), lambda b, i: (0, 0)),
            pl.BlockSpec((3 * C, 1), lambda b, i: (0, 0)),
        ],
        out_specs=pl.BlockSpec((None, 3 * C, tile_t), lambda b, i: (b, 0, i)),
        scratch_shapes=[
            pltpu.VMEM((stride, 2 * tile_t), jnp.float32),   # stitched window
            pltpu.VMEM((qs, tile_t), jnp.float32),           # in-VMEM tap matrix
        ],
        compiler_params=pltpu.CompilerParams(
            dimension_semantics=("parallel", "parallel")),
    )(frames, frames, w_all, b_all)

    # Kernel already produced PyTorch NCT layout; just trim the padded tail and
    # slice the channel bands (torch.cat([X1, X2, X3], dim=1) inverse).
    X = x_padded[:, :, :t_out]
    X1 = X[:, :C, :]
    X2 = X[:, C:2 * C, :]
    X3 = X[:, 2 * C:, :]
    return X, X1, X2, X3


# ----------------------------------------------------------------------------
# Pure-JAX reference (mirrors the PyTorch forward) for validation.
# ----------------------------------------------------------------------------
def _reference_forward(x, params, k_short, k_middle, k_long):
    w1, b1, w2, b2, w3, b3 = params
    C = w1.shape[0]
    stride = k_short // 2
    T = x.shape[-1]

    def conv1d(inp, w, b, pad):
        y = jax.lax.conv_general_dilated(
            inp, w.reshape(C, 1, -1),
            window_strides=(stride,), padding=[(pad, pad)],
            dimension_numbers=("NCH", "OIH", "NCH"),
            precision=jax.lax.Precision.HIGHEST)
        return jax.nn.relu(y + b[None, :, None])

    X1 = conv1d(x, w1, b1, k_short - 1)
    t_out = X1.shape[-1]
    t_mid = (t_out - 1) * stride + k_middle
    t_long = (t_out - 1) * stride + k_long
    x_mid = jnp.pad(x, ((0, 0), (0, 0), (0, t_mid - T)))
    x_long = jnp.pad(x, ((0, 0), (0, 0), (0, t_long - T)))
    X2 = conv1d(x_mid, w2, b2, 0)
    X3 = conv1d(x_long, w3, b3, 0)
    X = jnp.concatenate([X1, X2, X3], axis=1)
    return X, X1, X2, X3


if __name__ == "__main__":
    # Small, module-consistent hyper-parameters (kernel ratios 1:4:8 as in SpEx+).
    B, T = 2, 600
    C = 32                       # out_channels
    K_S, K_M, K_L = 8, 32, 64    # short / middle / long kernel lengths (stride = 4)

    key = jax.random.PRNGKey(0)
    kx, kw1, kb1, kw2, kb2, kw3, kb3 = jax.random.split(key, 7)

    x = jax.random.normal(kx, (B, 1, T), dtype=jnp.float32)

    def init_w(k, kernel_len):
        bound = 1.0 / (kernel_len ** 0.5)       # PyTorch Conv1d default fan-in init
        return jax.random.uniform(k, (C, kernel_len), jnp.float32, -bound, bound)

    def init_b(k, kernel_len):
        bound = 1.0 / (kernel_len ** 0.5)
        return jax.random.uniform(k, (C,), jnp.float32, -bound, bound)

    params = (init_w(kw1, K_S), init_b(kb1, K_S),
              init_w(kw2, K_M), init_b(kb2, K_M),
              init_w(kw3, K_L), init_b(kb3, K_L))

    # tile_t=128 so the test exercises multiple time tiles and the halo path.
    outs = encoder_block_forward(x, params, K_S, K_M, K_L, tile_t=128)
    outs = jax.block_until_ready(outs)

    refs = _reference_forward(x, params, K_S, K_M, K_L)
    for name, got, ref in zip(("X", "X1", "X2", "X3"), outs, refs):
        assert got.shape == ref.shape, (name, got.shape, ref.shape)
        assert jnp.allclose(got, ref, atol=2e-4, rtol=2e-4), name

    print("KERNEL_OK")
</pallas_src>

<mosaic_0001>
module attributes {stable_mosaic.version = 11 : i64} {
  func.func @_encoder_block_kernel(%arg0: i32, %arg1: i32, %arg2: memref<1x4x128xf32, #tpu.memory_space<vmem>>, %arg3: memref<1x4x128xf32, #tpu.memory_space<vmem>>, %arg4: memref<96x72xf32, #tpu.memory_space<vmem>>, %arg5: memref<96x1xf32, #tpu.memory_space<vmem>>, %arg6: memref<1x96x128xf32, #tpu.memory_space<vmem>>, %arg7: memref<4x256xf32, #tpu.memory_space<vmem>>, %arg8: memref<72x128xf32, #tpu.memory_space<vmem>>) attributes {dimension_semantics = [#tpu.dimension_semantics<parallel>, #tpu.dimension_semantics<parallel>], iteration_bounds = array<i64: 2, 2>, scalar_prefetch = 0 : i64, scratch_operands = 2 : i64, tpu.core_type = #tpu.core_type<tc>, window_params = [{transform_indices = @transform_0, window_bounds = array<i64: 1, 4, 128>}, {transform_indices = @transform_1, window_bounds = array<i64: 1, 4, 128>}, {pipeline_mode = #tpu.pipeline_mode<synchronous>, transform_indices = @transform_2, window_bounds = array<i64: 96, 72>}, {pipeline_mode = #tpu.pipeline_mode<synchronous>, transform_indices = @transform_3, window_bounds = array<i64: 96, 1>}, {transform_indices = @transform_4, window_bounds = array<i64: 1, 96, 128>}]} {
    %c0 = arith.constant 0 : index
    %c0_0 = arith.constant 0 : index
    %c0_1 = arith.constant 0 : index
    %0 = vector.load %arg2[%c0, %c0_0, %c0_1] : memref<1x4x128xf32, #tpu.memory_space<vmem>>, vector<1x4x128xf32>
    %1 = vector.shape_cast %0 : vector<1x4x128xf32> to vector<4x128xf32>
    %c0_2 = arith.constant 0 : index
    %c0_3 = arith.constant 0 : index
    %2 = vector.load %arg7[%c0_2, %c0_3] : memref<4x256xf32, #tpu.memory_space<vmem>>, vector<4x128xf32>
    tpu.vector_store %arg7[%c0_2, %c0_3], %1 {strides = array<i32>} : memref<4x256xf32, #tpu.memory_space<vmem>>, vector<4x128xf32>,
    %c0_4 = arith.constant 0 : index
    %c0_5 = arith.constant 0 : index
    %c0_6 = arith.constant 0 : index
    %3 = vector.load %arg3[%c0_4, %c0_5, %c0_6] : memref<1x4x128xf32, #tpu.memory_space<vmem>>, vector<1x4x128xf32>
    %4 = vector.shape_cast %3 : vector<1x4x128xf32> to vector<4x128xf32>
    %c0_7 = arith.constant 0 : index
    %c128 = arith.constant 128 : index
    %5 = vector.load %arg7[%c0_7, %c128] : memref<4x256xf32, #tpu.memory_space<vmem>>, vector<4x128xf32>
    tpu.vector_store %arg7[%c0_7, %c128], %4 {strides = array<i32>} : memref<4x256xf32, #tpu.memory_space<vmem>>, vector<4x128xf32>,
    %c0_8 = arith.constant 0 : index
    %c0_9 = arith.constant 0 : index
    %6 = vector.load %arg7[%c0_8, %c0_9] : memref<4x256xf32, #tpu.memory_space<vmem>>, vector<4x128xf32>
    %c0_10 = arith.constant 0 : index
    %c0_11 = arith.constant 0 : index
    %7 = vector.load %arg8[%c0_10, %c0_11] : memref<72x128xf32, #tpu.memory_space<vmem>>, vector<4x128xf32>
    tpu.vector_store %arg8[%c0_10, %c0_11], %6 {strides = array<i32>} : memref<72x128xf32, #tpu.memory_space<vmem>>, vector<4x128xf32>,
    %c0_12 = arith.constant 0 : index
    %c1 = arith.constant 1 : index
    %8 = vector.load %arg7[%c0_12, %c1] : memref<4x256xf32, #tpu.memory_space<vmem>>, vector<4x128xf32>
    %c4 = arith.constant 4 : index
    %c0_13 = arith.constant 0 : index
    %9 = vector.load %arg8[%c4, %c0_13] : memref<72x128xf32, #tpu.memory_space<vmem>>, vector<4x128xf32>
    tpu.vector_store %arg8[%c4, %c0_13], %8 {strides = array<i32>} : memref<72x128xf32, #tpu.memory_space<vmem>>, vector<4x128xf32>,
    %c0_14 = arith.constant 0 : index
    %c2 = arith.constant 2 : index
    %10 = vector.load %arg7[%c0_14, %c2] : memref<4x256xf32, #tpu.memory_space<vmem>>, vector<4x128xf32>
    %c8 = arith.constant 8 : index
    %c0_15 = arith.constant 0 : index
    %11 = vector.load %arg8[%c8, %c0_15] : memref<72x128xf32, #tpu.memory_space<vmem>>, vector<4x128xf32>
    tpu.vector_store %arg8[%c8, %c0_15], %10 {strides = array<i32>} : memref<72x128xf32, #tpu.memory_space<vmem>>, vector<4x128xf32>,
    %c0_16 = arith.constant 0 : index
    %c3 = arith.constant 3 : index
    %12 = vector.load %arg7[%c0_16, %c3] : memref<4x256xf32, #tpu.memory_space<vmem>>, vector<4x128xf32>
    %c12 = arith.constant 12 : index
    %c0_17 = arith.constant 0 : index
    %13 = vector.load %arg8[%c12, %c0_17] : memref<72x128xf32, #tpu.memory_space<vmem>>, vector<4x128xf32>
    tpu.vector_store %arg8[%c12, %c0_17], %12 {strides = array<i32>} : memref<72x128xf32, #tpu.memory_space<vmem>>, vector<4x128xf32>,
    %c0_18 = arith.constant 0 : index
    %c4_19 = arith.constant 4 : index
    %14 = vector.load %arg7[%c0_18, %c4_19] : memref<4x256xf32, #tpu.memory_space<vmem>>, vector<4x128xf32>
    %c16 = arith.constant 16 : index
    %c0_20 = arith.constant 0 : index
    %15 = vector.load %arg8[%c16, %c0_20] : memref<72x128xf32, #tpu.memory_space<vmem>>, vector<4x128xf32>
    tpu.vector_store %arg8[%c16, %c0_20], %14 {strides = array<i32>} : memref<72x128xf32, #tpu.memory_space<vmem>>, vector<4x128xf32>,
    %c0_21 = arith.constant 0 : index
    %c5 = arith.constant 5 : index
    %16 = vector.load %arg7[%c0_21, %c5] : memref<4x256xf32, #tpu.memory_space<vmem>>, vector<4x128xf32>
    %c20 = arith.constant 20 : index
    %c0_22 = arith.constant 0 : index
    %17 = vector.load %arg8[%c20, %c0_22] : memref<72x128xf32, #tpu.memory_space<vmem>>, vector<4x128xf32>
    tpu.vector_store %arg8[%c20, %c0_22], %16 {strides = array<i32>} : memref<72x128xf32, #tpu.memory_space<vmem>>, vector<4x128xf32>,
    %c0_23 = arith.constant 0 : index
    %c6 = arith.constant 6 : index
    %18 = vector.load %arg7[%c0_23, %c6] : memref<4x256xf32, #tpu.memory_space<vmem>>, vector<4x128xf32>
    %c24 = arith.constant 24 : index
    %c0_24 = arith.constant 0 : index
    %19 = vector.load %arg8[%c24, %c0_24] : memref<72x128xf32, #tpu.memory_space<vmem>>, vector<4x128xf32>
    tpu.vector_store %arg8[%c24, %c0_24], %18 {strides = array<i32>} : memref<72x128xf32, #tpu.memory_space<vmem>>, vector<4x128xf32>,
    %c0_25 = arith.constant 0 : index
    %c7 = arith.constant 7 : index
    %20 = vector.load %arg7[%c0_25, %c7] : memref<4x256xf32, #tpu.memory_space<vmem>>, vector<4x128xf32>
    %c28 = arith.constant 28 : index
    %c0_26 = arith.constant 0 : index
    %21 = vector.load %arg8[%c28, %c0_26] : memref<72x128xf32, #tpu.memory_space<vmem>>, vector<4x128xf32>
    tpu.vector_store %arg8[%c28, %c0_26], %20 {strides = array<i32>} : memref<72x128xf32, #tpu.memory_space<vmem>>, vector<4x128xf32>,
    %c0_27 = arith.constant 0 : index
    %c8_28 = arith.constant 8 : index
    %22 = vector.load %arg7[%c0_27, %c8_28] : memref<4x256xf32, #tpu.memory_space<vmem>>, vector<4x128xf32>
    %c32 = arith.constant 32 : index
    %c0_29 = arith.constant 0 : index
    %23 = vector.load %arg8[%c32, %c0_29] : memref<72x128xf32, #tpu.memory_space<vmem>>, vector<4x128xf32>
    tpu.vector_store %arg8[%c32, %c0_29], %22 {strides = array<i32>} : memref<72x128xf32, #tpu.memory_space<vmem>>, vector<4x128xf32>,
    %c0_30 = arith.constant 0 : index
    %c9 = arith.constant 9 : index
    %24 = vector.load %arg7[%c0_30, %c9] : memref<4x256xf32, #tpu.memory_space<vmem>>, vector<4x128xf32>
    %c36 = arith.constant 36 : index
    %c0_31 = arith.constant 0 : index
    %25 = vector.load %arg8[%c36, %c0_31] : memref<72x128xf32, #tpu.memory_space<vmem>>, vector<4x128xf32>
    tpu.vector_store %arg8[%c36, %c0_31], %24 {strides = array<i32>} : memref<72x128xf32, #tpu.memory_space<vmem>>, vector<4x128xf32>,
    %c0_32 = arith.constant 0 : index
    %c10 = arith.constant 10 : index
    %26 = vector.load %arg7[%c0_32, %c10] : memref<4x256xf32, #tpu.memory_space<vmem>>, vector<4x128xf32>
    %c40 = arith.constant 40 : index
    %c0_33 = arith.constant 0 : index
    %27 = vector.load %arg8[%c40, %c0_33] : memref<72x128xf32, #tpu.memory_space<vmem>>, vector<4x128xf32>
    tpu.vector_store %arg8[%c40, %c0_33], %26 {strides = array<i32>} : memref<72x128xf32, #tpu.memory_space<vmem>>, vector<4x128xf32>,
    %c0_34 = arith.constant 0 : index
    %c11 = arith.constant 11 : index
    %28 = vector.load %arg7[%c0_34, %c11] : memref<4x256xf32, #tpu.memory_space<vmem>>, vector<4x128xf32>
    %c44 = arith.constant 44 : index
    %c0_35 = arith.constant 0 : index
    %29 = vector.load %arg8[%c44, %c0_35] : memref<72x128xf32, #tpu.memory_space<vmem>>, vector<4x128xf32>
    tpu.vector_store %arg8[%c44, %c0_35], %28 {strides = array<i32>} : memref<72x128xf32, #tpu.memory_space<vmem>>, vector<4x128xf32>,
    %c0_36 = arith.constant 0 : index
    %c12_37 = arith.constant 12 : index
    %30 = vector.load %arg7[%c0_36, %c12_37] : memref<4x256xf32, #tpu.memory_space<vmem>>, vector<4x128xf32>
    %c48 = arith.constant 48 : index
    %c0_38 = arith.constant 0 : index
    %31 = vector.load %arg8[%c48, %c0_38] : memref<72x128xf32, #tpu.memory_space<vmem>>, vector<4x128xf32>
    tpu.vector_store %arg8[%c48, %c0_38], %30 {strides = array<i32>} : memref<72x128xf32, #tpu.memory_space<vmem>>, vector<4x128xf32>,
    %c0_39 = arith.constant 0 : index
    %c13 = arith.constant 13 : index
    %32 = vector.load %arg7[%c0_39, %c13] : memref<4x256xf32, #tpu.memory_space<vmem>>, vector<4x128xf32>
    %c52 = arith.constant 52 : index
    %c0_40 = arith.constant 0 : index
    %33 = vector.load %arg8[%c52, %c0_40] : memref<72x128xf32, #tpu.memory_space<vmem>>, vector<4x128xf32>
    tpu.vector_store %arg8[%c52, %c0_40], %32 {strides = array<i32>} : memref<72x128xf32, #tpu.memory_space<vmem>>, vector<4x128xf32>,
    %c0_41 = arith.constant 0 : index
    %c14 = arith.constant 14 : index
    %34 = vector.load %arg7[%c0_41, %c14] : memref<4x256xf32, #tpu.memory_space<vmem>>, vector<4x128xf32>
    %c56 = arith.constant 56 : index
    %c0_42 = arith.constant 0 : index
    %35 = vector.load %arg8[%c56, %c0_42] : memref<72x128xf32, #tpu.memory_space<vmem>>, vector<4x128xf32>
    tpu.vector_store %arg8[%c56, %c0_42], %34 {strides = array<i32>} : memref<72x128xf32, #tpu.memory_space<vmem>>, vector<4x128xf32>,
    %c0_43 = arith.constant 0 : index
    %c15 = arith.constant 15 : index
    %36 = vector.load %arg7[%c0_43, %c15] : memref<4x256xf32, #tpu.memory_space<vmem>>, vector<4x128xf32>
    %c60 = arith.constant 60 : index
    %c0_44 = arith.constant 0 : index
    %37 = vector.load %arg8[%c60, %c0_44] : memref<72x128xf32, #tpu.memory_space<vmem>>, vector<4x128xf32>
    tpu.vector_store %arg8[%c60, %c0_44], %36 {strides = array<i32>} : memref<72x128xf32, #tpu.memory_space<vmem>>, vector<4x128xf32>,
    %c0_45 = arith.constant 0 : index
    %c16_46 = arith.constant 16 : index
    %38 = vector.load %arg7[%c0_45, %c16_46] : memref<4x256xf32, #tpu.memory_space<vmem>>, vector<4x128xf32>
    %c64 = arith.constant 64 : index
    %c0_47 = arith.constant 0 : index
    %39 = vector.load %arg8[%c64, %c0_47] : memref<72x128xf32, #tpu.memory_space<vmem>>, vector<4x128xf32>
    tpu.vector_store %arg8[%c64, %c0_47], %38 {strides = array<i32>} : memref<72x128xf32, #tpu.memory_space<vmem>>, vector<4x128xf32>,
    %c0_48 = arith.constant 0 : index
    %c17 = arith.constant 17 : index
    %40 = vector.load %arg7[%c0_48, %c17] : memref<4x256xf32, #tpu.memory_space<vmem>>, vector<4x128xf32>
    %c68 = arith.constant 68 : index
    %c0_49 = arith.constant 0 : index
    %41 = vector.load %arg8[%c68, %c0_49] : memref<72x128xf32, #tpu.memory_space<vmem>>, vector<4x128xf32>
    tpu.vector_store %arg8[%c68, %c0_49], %40 {strides = array<i32>} : memref<72x128xf32, #tpu.memory_space<vmem>>, vector<4x128xf32>,
    %c0_50 = arith.constant 0 : index
    %c0_51 = arith.constant 0 : index
    %42 = vector.load %arg4[%c0_50, %c0_51] : memref<96x72xf32, #tpu.memory_space<vmem>>, vector<96x72xf32>
    %c0_52 = arith.constant 0 : index
    %c0_53 = arith.constant 0 : index
    %43 = vector.load %arg8[%c0_52, %c0_53] : memref<72x128xf32, #tpu.memory_space<vmem>>, vector<72x128xf32>
    %cst = arith.constant dense<0.000000e+00> : vector<96x128xf32>
    %44 = tpu.matmul %42, %43, %cst {dimension_numbers = #tpu.dot_dimension_numbers<[1], [0], [0], [1], [0, 0, 1, 1], [], []>} : vector<96x72xf32>, vector<72x128xf32>, vector<96x128xf32> -> vector<96x128xf32>
    %c0_54 = arith.constant 0 : index
    %c0_55 = arith.constant 0 : index
    %45 = vector.load %arg5[%c0_54, %c0_55] : memref<96x1xf32, #tpu.memory_space<vmem>>, vector<96x1xf32>
    %46 = vector.broadcast %45 : vector<96x1xf32> to vector<96x128xf32>
    %47 = arith.addf %44, %46 : vector<96x128xf32>
    %cst_56 = arith.constant 0.000000e+00 : f32
    %48 = vector.broadcast %cst_56 : f32 to vector<96x128xf32>
    %49 = arith.maximumf %47, %48 : vector<96x128xf32>
    %c0_57 = arith.constant 0 : index
    %c0_58 = arith.constant 0 : index
    %c0_59 = arith.constant 0 : index
    %50 = vector.load %arg6[%c0_57, %c0_58, %c0_59] : memref<1x96x128xf32, #tpu.memory_space<vmem>>, vector<1x96x128xf32>
    %51 = vector.shape_cast %50 : vector<1x96x128xf32> to vector<96x128xf32>
    %52 = vector.shape_cast %49 : vector<96x128xf32> to vector<1x96x128xf32>
    tpu.vector_store %arg6[%c0_57, %c0_58, %c0_59], %52 {strides = array<i32>} : memref<1x96x128xf32, #tpu.memory_space<vmem>>, vector<1x96x128xf32>,
    return
  }
  func.func @transform_0(%arg0: i32, %arg1: i32) -> (i32, i32, i32) {
    %c0_i32 = arith.constant 0 : i32
    %c0_i32_0 = arith.constant 0 : i32
    return %arg0, %c0_i32, %arg1 : i32, i32, i32
  }
  func.func @transform_1(%arg0: i32, %arg1: i32) -> (i32, i32, i32) {
    %c1_i32 = arith.constant 1 : i32
    %0 = arith.addi %arg1, %c1_i32 : i32
    %c0_i32 = arith.constant 0 : i32
    %c0_i32_0 = arith.constant 0 : i32
    return %arg0, %c0_i32, %0 : i32, i32, i32
  }
  func.func @transform_2(%arg0: i32, %arg1: i32) -> (i32, i32) {
    %c0_i32 = arith.constant 0 : i32
    %c0_i32_0 = arith.constant 0 : i32
    %c0_i32_1 = arith.constant 0 : i32
    return %c0_i32, %c0_i32_0 : i32, i32
  }
  func.func @transform_3(%arg0: i32, %arg1: i32) -> (i32, i32) {
    %c0_i32 = arith.constant 0 : i32
    %c0_i32_0 = arith.constant 0 : i32
    %c0_i32_1 = arith.constant 0 : i32
    return %c0_i32, %c0_i32_0 : i32, i32
  }
  func.func @transform_4(%arg0: i32, %arg1: i32) -> (i32, i32, i32) {
    %c0_i32 = arith.constant 0 : i32
    %c0_i32_0 = arith.constant 0 : i32
    return %arg0, %c0_i32, %arg1 : i32, i32, i32
  }
}

</mosaic_0001>

<llo_original>
// kernel: tpu_custom_call.1
$region0: #{tpu_custom_call.1}
  #allocation0 [shape = 'u32[]', space=smem, size = 0x4, offset = 0x4, fixed_abs, tag = 'smem constant byte address 0x4 - core index']
  #allocation1 [shape = 'u32[144,128]{1,0:T(1,128)}', space=vmem, size = 0x12000, scoped, tag = 'internal scratch']
  #allocation2 [shape = 'f32[4,256]{1,0:T(4,128)}', space=vmem, size = 0x1000, scoped, tag = 'scratch operand']
  #allocation3 [shape = 'f32[72,128]{1,0:T(8,128)}', space=vmem, size = 0x9000, scoped, tag = 'scratch operand']
  %s0 = inlined_call_operand.vmem [shape: f32[2,4,384], index: 0, kind: input, shape index: {}]
  %s1 = inlined_call_operand.vmem [shape: f32[2,4,384], index: 1, kind: input, shape index: {}]
  %s2 = inlined_call_operand.vmem [shape: f32[96,72], index: 2, kind: input, shape index: {}]
  %s3 = inlined_call_operand.vmem [shape: f32[96,1], index: 3, kind: input, shape index: {}]
  %s4 = inlined_call_operand.hbm [shape: f32[2,96,256], index: 4, kind: output, shape index: {}]
  %s5 = sld [smem:[#allocation0]]
  $region49: #{tpu_custom_call.1} parent=0
    _
  %s7 = ssub.s32 1, %s5
  %s8 = scalar_select 0, %s7, %s5
  $region1: #{tpu_custom_call.1} parent=0
    #allocation4 [shape = 'u8[98304]{0}', space=vmem, size = 0x18000, scoped, tag = 'output window, operand 0']
    #allocation5 [shape = 's32[2]{0}', space=sflag, size = 0x8, scoped, tag = 'scoped memory for tpu_custom_call.1']
    %9 = vsyncpa [#allocation5], 0
    %s10 = scalar_lea.sflag [#allocation5], 1
    %11 = vsyncpa %s10, 0
    loop: start=0, step=1, limit=6
    $region2: #{tpu_custom_call.1} parent=1 // loop_pre_header
      _
    $region3: #{tpu_custom_call.1} parent=1 // loop_header
      %s13 = sphi 0, %s17
      %p14 = scmp.ge.s32.totalorder %s13, 6
      %s20 = sphi 0, %s32
      %s21 = sphi 0, %s28
      %s22 = sphi 0, %s20
      %s23 = sphi 0, %s21
      %s24 = sphi 0, %s22
      %s25 = sphi 0, %s23
      %s37 = sphi 0, %s39
      %s40 = sphi 0, %s37
      %s41 = sphi 0, %s40
      %s57 = sphi 0, %s41
      %s67 = sphi 0, %s69
      %s70 = sphi 0, %s67
      %s71 = sphi 0, %s70
      %s87 = sphi 0, %s71
      %s91 = sphi 0, %s91
      %s93 = sphi 0, %s91
      %s94 = sphi 0, %s93
      %s108 = sphi 0, %s94
      %s112 = sphi 0, %s112
      %s114 = sphi 0, %s112
      %s115 = sphi 0, %s114
      %s129 = sphi 0, %s115
      %s137 = sphi 0, %s139
      %s140 = sphi 0, %s137
      %s141 = sphi 0, %s140
      %s157 = sphi 0, %s141
    $region4: #{tpu_custom_call.1} parent=1 // loop_header_branch
      %16 = sbr.rel (%p14) target = $region8
    $region5: #{tpu_custom_call.1} parent=1 // loop_body
      %s18 = ssub.s32 %s13, 1
      %s19 = ssub.s32 %s13, 2
      %s26 = sadd.s32 1, %s21
      %p27 = scmp.ge.s32.totalorder %s26, 2
      %s28 = scalar_select %p27, 0, %s26
      %s29 = sadd.s32 1, %s20
      %s30 = scalar_select %p27, %s29, %s20
      %p31 = scmp.ge.s32.totalorder %s30, 2
      %s32 = scalar_select %p31, 0, %s30
      %s33 = ssub.s32 %s20, %s32
      %s34 = ssub.s32 %s21, %s28
      %s35 = sor.u32 %s33, %s34
      %p36 = scmp.eq.s32.totalorder %s35, 0
      %s38 = sadd.s32 %s37, 1
      %s39 = scalar_select %p36, %s37, %s38
      %p42 = pneg %p36
      %p43 = scmp.eq.s32.totalorder %s13, 3
      %p44 = por %p42, %p43
      %p45 = scmp.ne.s32.totalorder %s37, %s40
      %p46 = scmp.eq.s32.totalorder %s13, 0
      %p47 = por %p45, %p46
      %p48 = scmp.ne.s32.totalorder %s37, %s40
      %p49 = scmp.eq.s32.totalorder %s18, 3
      %p50 = por %p48, %p49
      %p51 = scmp.ne.s32.totalorder %s40, %s41
      %p52 = scmp.eq.s32.totalorder %s18, 0
      %p53 = por %p51, %p52
      %p54 = scmp.ne.s32.totalorder %s40, %s41
      %p55 = scmp.eq.s32.totalorder %s19, 3
      %p56 = por %p54, %p55
      %p58 = scmp.ne.s32.totalorder %s41, %s57
      %p59 = scmp.eq.s32.totalorder %s19, 0
      %p60 = por %p58, %p59
      %s61 = sadd.s32 %s21, 1
      %s62 = sadd.s32 %s28, 1
      %s63 = ssub.s32 %s20, %s32
      %s64 = ssub.s32 %s61, %s62
      %s65 = sor.u32 %s63, %s64
      %p66 = scmp.eq.s32.totalorder %s65, 0
      %s68 = sadd.s32 %s67, 1
      %s69 = scalar_select %p66, %s67, %s68
      %p72 = pneg %p66
      %p73 = scmp.eq.s32.totalorder %s13, 3
      %p74 = por %p72, %p73
      %p75 = scmp.ne.s32.totalorder %s67, %s70
      %p76 = scmp.eq.s32.totalorder %s13, 0
      %p77 = por %p75, %p76
      %p78 = scmp.ne.s32.totalorder %s67, %s70
      %p79 = scmp.eq.s32.totalorder %s18, 3
      %p80 = por %p78, %p79
      %p81 = scmp.ne.s32.totalorder %s70, %s71
      %p82 = scmp.eq.s32.totalorder %s18, 0
      %p83 = por %p81, %p82
      %p84 = scmp.ne.s32.totalorder %s70, %s71
      %p85 = scmp.eq.s32.totalorder %s19, 3
      %p86 = por %p84, %p85
      %p88 = scmp.ne.s32.totalorder %s71, %s87
      %p89 = scmp.eq.s32.totalorder %s19, 0
      %p90 = por %p88, %p89
      %s92 = sadd.s32 %s91, 1
      %p95 = scmp.eq.s32.totalorder %s13, 3
      %p96 = scmp.ne.s32.totalorder %s91, %s93
      %p97 = scmp.eq.s32.totalorder %s13, 0
      %p98 = por %p96, %p97
      %p99 = scmp.ne.s32.totalorder %s91, %s93
      %p100 = scmp.eq.s32.totalorder %s18, 3
      %p101 = por %p99, %p100
      %p102 = scmp.ne.s32.totalorder %s93, %s94
      %p103 = scmp.eq.s32.totalorder %s18, 0
      %p104 = por %p102, %p103
      %p105 = scmp.ne.s32.totalorder %s93, %s94
      %p106 = scmp.eq.s32.totalorder %s19, 3
      %p107 = por %p105, %p106
      %p109 = scmp.ne.s32.totalorder %s94, %s108
      %p110 = scmp.eq.s32.totalorder %s19, 0
      %p111 = por %p109, %p110
      %s113 = sadd.s32 %s112, 1
      %p116 = scmp.eq.s32.totalorder %s13, 3
      %p117 = scmp.ne.s32.totalorder %s112, %s114
      %p118 = scmp.eq.s32.totalorder %s13, 0
      %p119 = por %p117, %p118
      %p120 = scmp.ne.s32.totalorder %s112, %s114
      %p121 = scmp.eq.s32.totalorder %s18, 3
      %p122 = por %p120, %p121
      %p123 = scmp.ne.s32.totalorder %s114, %s115
      %p124 = scmp.eq.s32.totalorder %s18, 0
      %p125 = por %p123, %p124
      %p126 = scmp.ne.s32.totalorder %s114, %s115
      %p127 = scmp.eq.s32.totalorder %s19, 3
      %p128 = por %p126, %p127
      %p130 = scmp.ne.s32.totalorder %s115, %s129
      %p131 = scmp.eq.s32.totalorder %s19, 0
      %p132 = por %p130, %p131
      %s133 = ssub.s32 %s20, %s32
      %s134 = ssub.s32 %s21, %s28
      %s135 = sor.u32 %s133, %s134
      %p136 = scmp.eq.s32.totalorder %s135, 0
      %s138 = sadd.s32 %s137, 1
      %s139 = scalar_select %p136, %s137, %s138
      %p142 = pneg %p136
      %p143 = scmp.eq.s32.totalorder %s13, 3
      %p144 = por %p142, %p143
      %p145 = scmp.ne.s32.totalorder %s137, %s140
      %p146 = scmp.eq.s32.totalorder %s13, 0
      %p147 = por %p145, %p146
      %p148 = scmp.ne.s32.totalorder %s137, %s140
      %p149 = scmp.eq.s32.totalorder %s18, 3
      %p150 = por %p148, %p149
      %p151 = scmp.ne.s32.totalorder %s140, %s141
      %p152 = scmp.eq.s32.totalorder %s18, 0
      %p153 = por %p151, %p152
      %p154 = scmp.ne.s32.totalorder %s140, %s141
      %p155 = scmp.eq.s32.totalorder %s19, 3
      %p156 = por %p154, %p155
      %p158 = scmp.ne.s32.totalorder %s141, %s157
      %p159 = scmp.eq.s32.totalorder %s19, 0
      %p160 = por %p158, %p159
      %p161 = scmp.le.s32.totalorder 1, %s13
      %p162 = scmp.lt.s32.totalorder %s13, 5
      %p163 = pnand %p161, %p162
      %p164 = pneg %p163
      // Predicated region
      $region9: #{tpu_custom_call.1} parent=5 // pred_check
        _
      $region10: #{tpu_custom_call.1} parent=5 // pred_check_branch
        %166 = sbr.rel (%p163) target = $region12
      $region11: #{tpu_custom_call.1} parent=5 // pred_region
        %s167 = ssub.s32 %s13, 1
        // Predicated region
        $region13: #{tpu_custom_call.1} parent=11 // pred_check
          %p168 = pneg %p104
        $region14: #{tpu_custom_call.1} parent=11 // pred_check_branch
          %170 = sbr.rel (%p168) target = $region16
        $region15: #{tpu_custom_call.1} parent=11 // pred_region
          _
        $region16: #{tpu_custom_call.1} parent=11 // pred_fallthru
          _
        // Predicated region
        $region17: #{tpu_custom_call.1} parent=11 // pred_check
          %p171 = pneg %p125
        $region18: #{tpu_custom_call.1} parent=11 // pred_check_branch
          %173 = sbr.rel (%p171) target = $region20
        $region19: #{tpu_custom_call.1} parent=11 // pred_region
          _
        $region20: #{tpu_custom_call.1} parent=11 // pred_fallthru
          _
      $region12: #{tpu_custom_call.1} parent=5 // pred_fallthru
        _
      %p174 = scmp.lt.s32.totalorder %s13, 4
      // Predicated region
      $region21: #{tpu_custom_call.1} parent=5 // pred_check
        %p175 = pneg %p174
      $region22: #{tpu_custom_call.1} parent=5 // pred_check_branch
        %177 = sbr.rel (%p175) target = $region24
      $region23: #{tpu_custom_call.1} parent=5 // pred_region
        // Predicated region
        $region25: #{tpu_custom_call.1} parent=23 // pred_check
          %p178 = pneg %p47
        $region26: #{tpu_custom_call.1} parent=23 // pred_check_branch
          %180 = sbr.rel (%p178) target = $region28
        $region27: #{tpu_custom_call.1} parent=23 // pred_region
          %p181 = scmp.lt.s32.totalorder %s20, 1
          %s182 = scalar_select %p181, %s20, 1
          %p183 = scmp.lt.s32.totalorder %s21, 2
          %s184 = scalar_select %p183, %s21, 2
          %s185 = smul.addr %s182, 3
          %s186 = sadd.s32 %s184, %s185
          %s187 = smul.addr %s186, 4
          %s188 = scalar_lea.vmem %s0, %s187
        $region28: #{tpu_custom_call.1} parent=23 // pred_fallthru
          _
        // Predicated region
        $region29: #{tpu_custom_call.1} parent=23 // pred_check
          %p189 = pneg %p77
        $region30: #{tpu_custom_call.1} parent=23 // pred_check_branch
          %191 = sbr.rel (%p189) target = $region32
        $region31: #{tpu_custom_call.1} parent=23 // pred_region
          %s192 = sadd.s32 %s21, 1
          %p193 = scmp.lt.s32.totalorder %s20, 1
          %s194 = scalar_select %p193, %s20, 1
          %p195 = scmp.lt.s32.totalorder %s192, 2
          %s196 = scalar_select %p195, %s192, 2
          %s197 = smul.addr %s194, 3
          %s198 = sadd.s32 %s196, %s197
          %s199 = smul.addr %s198, 4
          %s200 = scalar_lea.vmem %s1, %s199
          %s201 = sadd.s32 %s21, 1
        $region32: #{tpu_custom_call.1} parent=23 // pred_fallthru
          _
      $region24: #{tpu_custom_call.1} parent=5 // pred_fallthru
        _
      %p202 = scmp.le.s32.totalorder 1, %s13
      %p203 = scmp.lt.s32.totalorder %s13, 5
      %p204 = pnand %p202, %p203
      %p205 = pneg %p204
      // Predicated region
      $region33: #{tpu_custom_call.1} parent=5 // pred_check
        _
      $region34: #{tpu_custom_call.1} parent=5 // pred_check_branch
        %207 = sbr.rel (%p204) target = $region36
      $region35: #{tpu_custom_call.1} parent=5 // pred_region
        %s208 = ssub.s32 %s13, 1
        %p209 = scmp.lt.s32.totalorder %s22, 1
        %s210 = scalar_select %p209, %s22, 1
        %p211 = scmp.lt.s32.totalorder %s23, 2
        %s212 = scalar_select %p211, %s23, 2
        %s213 = smul.addr %s210, 3
        %s214 = sadd.s32 %s212, %s213
        %s215 = smul.addr %s214, 4
        %s216 = scalar_lea.vmem %s0, %s215
        %p217 = pneg %p53
        %p218 = pneg %p50
        %s219 = sadd.s32 %s23, 1
        %p220 = scmp.lt.s32.totalorder %s22, 1
        %s221 = scalar_select %p220, %s22, 1
        %p222 = scmp.lt.s32.totalorder %s219, 2
        %s223 = scalar_select %p222, %s219, 2
        %s224 = smul.addr %s221, 3
        %s225 = sadd.s32 %s223, %s224
        %s226 = smul.addr %s225, 4
        %s227 = scalar_lea.vmem %s1, %s226
        %p228 = pneg %p83
        %p229 = pneg %p80
        %p230 = pneg %p104
        %p231 = pneg %p101
        %p232 = pneg %p125
        %p233 = pneg %p122
        %p234 = pneg %p153
        %p235 = pneg %p150
        %s236 = sand.u32 %s140, 1
        %s237 = scalar_lea.sflag [#allocation5], %s236
        %s238 = sand.u32 %s140, 1
        %s239 = smul.addr %s238, 96
        %s240 = scalar_lea.vmem [#allocation4], %s239
        %p241 = scmp.lt.s32.totalorder %s22, 1
        %s242 = scalar_select %p241, %s22, 1
        %p243 = scmp.lt.s32.totalorder %s23, 2
        %s244 = scalar_select %p243, %s23, 2
        %s245 = smul.addr %s242, 3
        %s246 = sadd.s32 %s244, %s245
        %s247 = smul.addr %s246, 4
        %s248 = scalar_lea.vmem %s0, %s247
        %s249 = sadd.s32 %s23, 1
        %p250 = scmp.lt.s32.totalorder %s22, 1
        %s251 = scalar_select %p250, %s22, 1
        %p252 = scmp.lt.s32.totalorder %s249, 2
        %s253 = scalar_select %p252, %s249, 2
        %s254 = smul.addr %s251, 3
        %s255 = sadd.s32 %s253, %s254
        %s256 = smul.addr %s255, 4
        %s257 = scalar_lea.vmem %s1, %s256
        %s258 = sadd.s32 %s23, 1
        %v259 = vld [vmem:[%s248] sm:$0xf]
        %260 = vst [vmem:[#allocation2] sm:$0xf] %v259
        %v261 = vld [vmem:[%s257] sm:$0xf]
        %262 = vst [vmem:[#allocation2 + $0x4] sm:$0xf] %v261
        %v263 = vld [vmem:[#allocation2] sm:$0xf]
        %264 = vst [vmem:[#allocation3] sm:$0xf] %v263
        %v265 = vld [vmem:[#allocation2] sm:$0xff]
        %v267 = vcombine.high %v265, %v265
        %268 = vrot.lane.b32.xlu0 %v265, 127
        %v269 = vpop.permute.xlu0 %268
        %270 = vrot.lane.b32.xlu0 %v267, 127
        %v271 = vpop.permute.xlu0 %270
        %vm272 = vcmask 1039360
        %v273 = vsel %vm272, %v269, %v271
        %275 = vst [vmem:[#allocation3 + $0x4] sm:$0xf] %v273
        %v276 = vld [vmem:[#allocation2] sm:$0xff]
        %v278 = vcombine.high %v276, %v276
        %279 = vrot.lane.b32.xlu0 %v276, 126
        %v280 = vpop.permute.xlu0 %279
        %281 = vrot.lane.b32.xlu0 %v278, 126
        %v282 = vpop.permute.xlu0 %281
        %vm283 = vcmask 1031168
        %v284 = vsel %vm283, %v280, %v282
        %286 = vst [vmem:[#allocation3 + $0x8] sm:$0xf] %v284
        %v287 = vld [vmem:[#allocation2] sm:$0xff]
        %v289 = vcombine.high %v287, %v287
        %290 = vrot.lane.b32.xlu0 %v287, 125
        %v291 = vpop.permute.xlu0 %290
        %292 = vrot.lane.b32.xlu0 %v289, 125
        %v293 = vpop.permute.xlu0 %292
        %vm294 = vcmask 1022976
        %v295 = vsel %vm294, %v291, %v293
        %297 = vst [vmem:[#allocation3 + $0xc] sm:$0xf] %v295
        %v298 = vld [vmem:[#allocation2] sm:$0xff]
        %v300 = vcombine.high %v298, %v298
        %301 = vrot.lane.b32.xlu0 %v298, 124
        %v302 = vpop.permute.xlu0 %301
        %303 = vrot.lane.b32.xlu0 %v300, 124
        %v304 = vpop.permute.xlu0 %303
        %vm305 = vcmask 1014784
        %v306 = vsel %vm305, %v302, %v304
        %308 = vst [vmem:[#allocation3 + $0x10] sm:$0xf] %v306
        %v309 = vld [vmem:[#allocation2] sm:$0xff]
        %v311 = vcombine.high %v309, %v309
        %312 = vrot.lane.b32.xlu0 %v309, 123
        %v313 = vpop.permute.xlu0 %312
        %314 = vrot.lane.b32.xlu0 %v311, 123
        %v315 = vpop.permute.xlu0 %314
        %vm316 = vcmask 1006592
        %v317 = vsel %vm316, %v313, %v315
        %319 = vst [vmem:[#allocation3 + $0x14] sm:$0xf] %v317
        %v320 = vld [vmem:[#allocation2] sm:$0xff]
        %v322 = vcombine.high %v320, %v320
        %323 = vrot.lane.b32.xlu0 %v320, 122
        %v324 = vpop.permute.xlu0 %323
        %325 = vrot.lane.b32.xlu0 %v322, 122
        %v326 = vpop.permute.xlu0 %325
        %vm327 = vcmask 998400
        %v328 = vsel %vm327, %v324, %v326
        %330 = vst [vmem:[#allocation3 + $0x18] sm:$0xf] %v328
        %v331 = vld [vmem:[#allocation2] sm:$0xff]
        %v333 = vcombine.high %v331, %v331
        %334 = vrot.lane.b32.xlu0 %v331, 121
        %v335 = vpop.permute.xlu0 %334
        %336 = vrot.lane.b32.xlu0 %v333, 121
        %v337 = vpop.permute.xlu0 %336
        %vm338 = vcmask 990208
        %v339 = vsel %vm338, %v335, %v337
        %341 = vst [vmem:[#allocation3 + $0x1c] sm:$0xf] %v339
        %v342 = vld [vmem:[#allocation2] sm:$0xff]
        %v344 = vcombine.high %v342, %v342
        %345 = vrot.lane.b32.xlu0 %v342, 120
        %v346 = vpop.permute.xlu0 %345
        %347 = vrot.lane.b32.xlu0 %v344, 120
        %v348 = vpop.permute.xlu0 %347
        %vm349 = vcmask 982016
        %v350 = vsel %vm349, %v346, %v348
        %352 = vst [vmem:[#allocation3 + $0x20] sm:$0xf] %v350
        %v353 = vld [vmem:[#allocation2] sm:$0xff]
        %v355 = vcombine.high %v353, %v353
        %356 = vrot.lane.b32.xlu0 %v353, 119
        %v357 = vpop.permute.xlu0 %356
        %358 = vrot.lane.b32.xlu0 %v355, 119
        %v359 = vpop.permute.xlu0 %358
        %vm360 = vcmask 973824
        %v361 = vsel %vm360, %v357, %v359
        %363 = vst [vmem:[#allocation3 + $0x24] sm:$0xf] %v361
        %v364 = vld [vmem:[#allocation2] sm:$0xff]
        %v366 = vcombine.high %v364, %v364
        %367 = vrot.lane.b32.xlu0 %v364, 118
        %v368 = vpop.permute.xlu0 %367
        %369 = vrot.lane.b32.xlu0 %v366, 118
        %v370 = vpop.permute.xlu0 %369
        %vm371 = vcmask 965632
        %v372 = vsel %vm371, %v368, %v370
        %374 = vst [vmem:[#allocation3 + $0x28] sm:$0xf] %v372
        %v375 = vld [vmem:[#allocation2] sm:$0xff]
        %v377 = vcombine.high %v375, %v375
        %378 = vrot.lane.b32.xlu0 %v375, 117
        %v379 = vpop.permute.xlu0 %378
        %380 = vrot.lane.b32.xlu0 %v377, 117
        %v381 = vpop.permute.xlu0 %380
        %vm382 = vcmask 957440
        %v383 = vsel %vm382, %v379, %v381
        %385 = vst [vmem:[#allocation3 + $0x2c] sm:$0xf] %v383
        %v386 = vld [vmem:[#allocation2] sm:$0xff]
        %v388 = vcombine.high %v386, %v386
        %389 = vrot.lane.b32.xlu0 %v386, 116
        %v390 = vpop.permute.xlu0 %389
        %391 = vrot.lane.b32.xlu0 %v388, 116
        %v392 = vpop.permute.xlu0 %391
        %vm393 = vcmask 949248
        %v394 = vsel %vm393, %v390, %v392
        %396 = vst [vmem:[#allocation3 + $0x30] sm:$0xf] %v394
        %v397 = vld [vmem:[#allocation2] sm:$0xff]
        %v399 = vcombine.high %v397, %v397
        %400 = vrot.lane.b32.xlu0 %v397, 115
        %v401 = vpop.permute.xlu0 %400
        %402 = vrot.lane.b32.xlu0 %v399, 115
        %v403 = vpop.permute.xlu0 %402
        %vm404 = vcmask 941056
        %v405 = vsel %vm404, %v401, %v403
        %407 = vst [vmem:[#allocation3 + $0x34] sm:$0xf] %v405
        %v408 = vld [vmem:[#allocation2] sm:$0xff]
        %v410 = vcombine.high %v408, %v408
        %411 = vrot.lane.b32.xlu0 %v408, 114
        %v412 = vpop.permute.xlu0 %411
        %413 = vrot.lane.b32.xlu0 %v410, 114
        %v414 = vpop.permute.xlu0 %413
        %vm415 = vcmask 932864
        %v416 = vsel %vm415, %v412, %v414
        %418 = vst [vmem:[#allocation3 + $0x38] sm:$0xf] %v416
        %v419 = vld [vmem:[#allocation2] sm:$0xff]
        %v421 = vcombine.high %v419, %v419
        %422 = vrot.lane.b32.xlu0 %v419, 113
        %v423 = vpop.permute.xlu0 %422
        %424 = vrot.lane.b32.xlu0 %v421, 113
        %v425 = vpop.permute.xlu0 %424
        %vm426 = vcmask 924672
        %v427 = vsel %vm426, %v423, %v425
        %429 = vst [vmem:[#allocation3 + $0x3c] sm:$0xf] %v427
        %v430 = vld [vmem:[#allocation2] sm:$0xff]
        %v432 = vcombine.high %v430, %v430
        %433 = vrot.lane.b32.xlu0 %v430, 112
        %v434 = vpop.permute.xlu0 %433
        %435 = vrot.lane.b32.xlu0 %v432, 112
        %v436 = vpop.permute.xlu0 %435
        %vm437 = vcmask 916480
        %v438 = vsel %vm437, %v434, %v436
        %440 = vst [vmem:[#allocation3 + $0x40] sm:$0xf] %v438
        %v441 = vld [vmem:[#allocation2] sm:$0xff]
        %v443 = vcombine.high %v441, %v441
        %444 = vrot.lane.b32.xlu0 %v441, 111
        %v445 = vpop.permute.xlu0 %444
        %446 = vrot.lane.b32.xlu0 %v443, 111
        %v447 = vpop.permute.xlu0 %446
        %vm448 = vcmask 908288
        %v449 = vsel %vm448, %v445, %v447
        %451 = vst [vmem:[#allocation3 + $0x44] sm:$0xf] %v449
        %v452 = vld [vmem:[%s2] sm:$0xff]
        %v453 = vld [vmem:[%s2 + $0x8] sm:$0xff]
        %v454 = vld [vmem:[%s2 + $0x10] sm:$0xff]
        %v455 = vld [vmem:[%s2 + $0x18] sm:$0xff]
        %v456 = vld [vmem:[%s2 + $0x20] sm:$0xff]
        %v457 = vld [vmem:[%s2 + $0x28] sm:$0xff]
        %v458 = vld [vmem:[%s2 + $0x30] sm:$0xff]
        %v459 = vld [vmem:[%s2 + $0x38] sm:$0xff]
        %v460 = vld [vmem:[%s2 + $0x40] sm:$0xff]
        %v461 = vld [vmem:[%s2 + $0x48] sm:$0xff]
        %v462 = vld [vmem:[%s2 + $0x50] sm:$0xff]
        %v463 = vld [vmem:[%s2 + $0x58] sm:$0xff]
        %v464 = vld [vmem:[#allocation3] sm:$0xff]
        %v465 = vld [vmem:[#allocation3 + $0x8] sm:$0xff]
        %v466 = vld [vmem:[#allocation3 + $0x10] sm:$0xff]
        %v467 = vld [vmem:[#allocation3 + $0x18] sm:$0xff]
        %v468 = vld [vmem:[#allocation3 + $0x20] sm:$0xff]
        %v469 = vld [vmem:[#allocation3 + $0x28] sm:$0xff]
        %v470 = vld [vmem:[#allocation3 + $0x30] sm:$0xff]
        %v471 = vld [vmem:[#allocation3 + $0x38] sm:$0xff]
        %v472 = vld [vmem:[#allocation3 + $0x40] sm:$0xff]
        %v473 = vld [vmem:[%s3] sm:$0xff]
        %v474 = vld [vmem:[%s3 + $0x8] sm:$0xff]
        %v475 = vld [vmem:[%s3 + $0x10] sm:$0xff]
        %v476 = vld [vmem:[%s3 + $0x18] sm:$0xff]
        %v477 = vld [vmem:[%s3 + $0x20] sm:$0xff]
        %v478 = vld [vmem:[%s3 + $0x28] sm:$0xff]
        %v479 = vld [vmem:[%s3 + $0x30] sm:$0xff]
        %v480 = vld [vmem:[%s3 + $0x38] sm:$0xff]
        %v481 = vld [vmem:[%s3 + $0x40] sm:$0xff]
        %v482 = vld [vmem:[%s3 + $0x48] sm:$0xff]
        %v483 = vld [vmem:[%s3 + $0x50] sm:$0xff]
        %v484 = vld [vmem:[%s3 + $0x58] sm:$0xff]
        %486 = vset.pattern.permute.xlu0 0
        %487 = vperm.xlu0 %486, %v473
        %v488 = vpop.permute.xlu0 %487
        %491 = vset.pattern.permute.xlu0 0
        %492 = vperm.xlu0 %491, %v474
        %v493 = vpop.permute.xlu0 %492
        %496 = vset.pattern.permute.xlu0 0
        %497 = vperm.xlu0 %496, %v475
        %v498 = vpop.permute.xlu0 %497
        %501 = vset.pattern.permute.xlu0 0
        %502 = vperm.xlu0 %501, %v476
        %v503 = vpop.permute.xlu0 %502
        %506 = vset.pattern.permute.xlu0 0
        %507 = vperm.xlu0 %506, %v477
        %v508 = vpop.permute.xlu0 %507
        %511 = vset.pattern.permute.xlu0 0
        %512 = vperm.xlu0 %511, %v478
        %v513 = vpop.permute.xlu0 %512
        %516 = vset.pattern.permute.xlu0 0
        %517 = vperm.xlu0 %516, %v479
        %v518 = vpop.permute.xlu0 %517
        %521 = vset.pattern.permute.xlu0 0
        %522 = vperm.xlu0 %521, %v480
        %v523 = vpop.permute.xlu0 %522
        %526 = vset.pattern.permute.xlu0 0
        %527 = vperm.xlu0 %526, %v481
        %v528 = vpop.permute.xlu0 %527
        %531 = vset.pattern.permute.xlu0 0
        %532 = vperm.xlu0 %531, %v482
        %v533 = vpop.permute.xlu0 %532
        %536 = vset.pattern.permute.xlu0 0
        %537 = vperm.xlu0 %536, %v483
        %v538 = vpop.permute.xlu0 %537
        %541 = vset.pattern.permute.xlu0 0
        %542 = vperm.xlu0 %541, %v484
        %v543 = vpop.permute.xlu0 %542
        %vm545 = vcmask 588800
        %v547 = vsel %vm545, %v452, 0
        %v550 = vsel %vm545, %v453, 0
        %v553 = vsel %vm545, %v454, 0
        %v556 = vsel %vm545, %v455, 0
        %v559 = vsel %vm545, %v456, 0
        %v562 = vsel %vm545, %v457, 0
        %v565 = vsel %vm545, %v458, 0
        %v568 = vsel %vm545, %v459, 0
        %v571 = vsel %vm545, %v460, 0
        %v574 = vsel %vm545, %v461, 0
        %v577 = vsel %vm545, %v462, 0
        %v580 = vsel %vm545, %v463, 0
        %582 = vmatprep.subr.mxu0 0.0
        %583 = vmatpush1.msra.mxu0 0.0
        %584 = vmatprep.subr.mxu0 0.0
        %585 = vmatpush1.msra.mxu0 0.0
        %586 = vmatprep.subr.mxu0 0.0
        %587 = vmatpush1.msra.mxu0 0.0
        %588 = vmatprep.subr.mxu0 0.0
        %589 = vmatpush1.msra.mxu0 0.0
        %590 = vmatprep.subr.mxu0 0.0
        %591 = vmatpush1.msra.mxu0 0.0
        %592 = vmatprep.subr.mxu0 0.0
        %593 = vmatpush1.msra.mxu0 0.0
        %594 = vmatprep.subr.mxu0 0.0
        %595 = vmatpush1.msra.mxu0 0.0
        %596 = vmatprep.subr.mxu0 0.0
        %597 = vmatpush1.msra.mxu0 %v472
        %598 = vmatprep.subr.mxu0 0.0
        %599 = vmatpush1.msra.mxu0 %v471
        %600 = vmatprep.subr.mxu0 0.0
        %601 = vmatpush1.msra.mxu0 %v470
        %602 = vmatprep.subr.mxu0 0.0
        %603 = vmatpush1.msra.mxu0 %v469
        %604 = vmatprep.subr.mxu0 0.0
        %605 = vmatpush1.msra.mxu0 %v468
        %606 = vmatprep.subr.mxu0 0.0
        %607 = vmatpush1.msra.mxu0 %v467
        %608 = vmatprep.subr.mxu0 0.0
        %609 = vmatpush1.msra.mxu0 %v466
        %610 = vmatprep.subr.mxu0 0.0
        %611 = vmatpush1.msra.mxu0 %v465
        %612 = vmatprep.subr.mxu0 0.0
        %613 = vmatpush1.msra.mxu0 %v464
        %614 = vmatprep.subr.mxu0 0.0
        %615 = vmatpush2.msra.mxu0 0.0
        %616 = vmatprep.subr.mxu0 0.0
        %617 = vmatpush2.msra.mxu0 0.0
        %618 = vmatprep.subr.mxu0 0.0
        %619 = vmatpush2.msra.mxu0 0.0
        %620 = vmatprep.subr.mxu0 0.0
        %621 = vmatpush2.msra.mxu0 0.0
        %622 = vmatprep.subr.mxu0 0.0
        %623 = vmatpush2.msra.mxu0 0.0
        %624 = vmatprep.subr.mxu0 0.0
        %625 = vmatpush2.msra.mxu0 0.0
        %626 = vmatprep.subr.mxu0 0.0
        %627 = vmatpush2.msra.mxu0 0.0
        %628 = vmatprep.subr.mxu0 0.0
        %629 = vmatpush2.msra.mxu0 0.0
        %630 = vmatprep.subr.mxu0 0.0
        %631 = vmatpush2.msra.mxu0 0.0
        %632 = vmatprep.subr.mxu0 0.0
        %633 = vmatpush2.msra.mxu0 0.0
        %634 = vmatprep.subr.mxu0 0.0
        %635 = vmatpush2.msra.mxu0 0.0
        %636 = vmatprep.subr.mxu0 0.0
        %637 = vmatpush2.msra.mxu0 0.0
        %638 = vmatprep.subr.mxu0 0.0
        %639 = vmatpush2.msra.mxu0 0.0
        %640 = vmatprep.subr.mxu0 0.0
        %641 = vmatpush2.msra.mxu0 0.0
        %642 = vmatprep.subr.mxu0 0.0
        %643 = vmatpush2.msra.mxu0 0.0
        %644 = vmatprep.subr.mxu0 0.0
        %645 = vmatpush2.msra.mxu0 0.0
        %646 = vmatprep.mubr.f32.mxu0 0.0
        %647 = vmatmul.mubr.f32.gmra.mxu0 %v547
        %v648 = vpop.f32.mrf.mxu0
        %v649 = vadd.f32 %v488, %v648
        %v650 = vpop.f32.mrf.mxu0
        %651 = vmatprep.mubr.f32.mxu0 0.0
        %652 = vmatmul.mubr.f32.gmra.mxu0 %v550
        %v653 = vpop.f32.mrf.mxu0
        %v654 = vadd.f32 %v493, %v653
        %v655 = vpop.f32.mrf.mxu0
        %656 = vmatprep.mubr.f32.mxu0 0.0
        %657 = vmatmul.mubr.f32.gmra.mxu0 %v553
        %v658 = vpop.f32.mrf.mxu0
        %v659 = vadd.f32 %v498, %v658
        %v660 = vpop.f32.mrf.mxu0
        %661 = vmatprep.mubr.f32.mxu0 0.0
        %662 = vmatmul.mubr.f32.gmra.mxu0 %v556
        %v663 = vpop.f32.mrf.mxu0
        %v664 = vadd.f32 %v503, %v663
        %v665 = vpop.f32.mrf.mxu0
        %666 = vmatprep.mubr.f32.mxu0 0.0
        %667 = vmatmul.mubr.f32.gmra.mxu0 %v559
        %v668 = vpop.f32.mrf.mxu0
        %v669 = vadd.f32 %v508, %v668
        %v670 = vpop.f32.mrf.mxu0
        %671 = vmatprep.mubr.f32.mxu0 0.0
        %672 = vmatmul.mubr.f32.gmra.mxu0 %v562
        %v673 = vpop.f32.mrf.mxu0
        %v674 = vadd.f32 %v513, %v673
        %v675 = vpop.f32.mrf.mxu0
        %676 = vmatprep.mubr.f32.mxu0 0.0
        %677 = vmatmul.mubr.f32.gmra.mxu0 %v565
        %v678 = vpop.f32.mrf.mxu0
        %v679 = vadd.f32 %v518, %v678
        %v680 = vpop.f32.mrf.mxu0
        %681 = vmatprep.mubr.f32.mxu0 0.0
        %682 = vmatmul.mubr.f32.gmra.mxu0 %v568
        %v683 = vpop.f32.mrf.mxu0
        %v684 = vadd.f32 %v523, %v683
        %v685 = vpop.f32.mrf.mxu0
        %686 = vmatprep.mubr.f32.mxu0 0.0
        %687 = vmatmul.mubr.f32.gmra.mxu0 %v571
        %v688 = vpop.f32.mrf.mxu0
        %v689 = vadd.f32 %v528, %v688
        %v690 = vpop.f32.mrf.mxu0
        %691 = vmatprep.mubr.f32.mxu0 0.0
        %692 = vmatmul.mubr.f32.gmra.mxu0 %v574
        %v693 = vpop.f32.mrf.mxu0
        %v694 = vadd.f32 %v533, %v693
        %v695 = vpop.f32.mrf.mxu0
        %696 = vmatprep.mubr.f32.mxu0 0.0
        %697 = vmatmul.mubr.f32.gmra.mxu0 %v577
        %v698 = vpop.f32.mrf.mxu0
        %v699 = vadd.f32 %v538, %v698
        %v700 = vpop.f32.mrf.mxu0
        %701 = vmatprep.mubr.f32.mxu0 0.0
        %702 = vmatmul.mubr.f32.gmra.mxu0 %v580
        %v703 = vpop.f32.mrf.mxu0
        %v704 = vadd.f32 %v543, %v703
        %v705 = vpop.f32.mrf.mxu0
        %706 = vdwg.mxu0
        %v707 = vmax.f32 %v649, 0.0
        %v708 = vmax.f32 %v654, 0.0
        %v709 = vmax.f32 %v659, 0.0
        %v710 = vmax.f32 %v664, 0.0
        %v711 = vmax.f32 %v669, 0.0
        %v712 = vmax.f32 %v674, 0.0
        %v713 = vmax.f32 %v679, 0.0
        %v714 = vmax.f32 %v684, 0.0
        %v715 = vmax.f32 %v689, 0.0
        %v716 = vmax.f32 %v694, 0.0
        %v717 = vmax.f32 %v699, 0.0
        %v718 = vmax.f32 %v704, 0.0
        %719 = vst [vmem:[%s240] sm:$0xff] %v707
        %720 = vst [vmem:[%s240 + $0x8] sm:$0xff] %v708
        %721 = vst [vmem:[%s240 + $0x10] sm:$0xff] %v709
        %722 = vst [vmem:[%s240 + $0x18] sm:$0xff] %v710
        %723 = vst [vmem:[%s240 + $0x20] sm:$0xff] %v711
        %724 = vst [vmem:[%s240 + $0x28] sm:$0xff] %v712
        %725 = vst [vmem:[%s240 + $0x30] sm:$0xff] %v713
        %726 = vst [vmem:[%s240 + $0x38] sm:$0xff] %v714
        %727 = vst [vmem:[%s240 + $0x40] sm:$0xff] %v715
        %728 = vst [vmem:[%s240 + $0x48] sm:$0xff] %v716
        %729 = vst [vmem:[%s240 + $0x50] sm:$0xff] %v717
        %730 = vst [vmem:[%s240 + $0x58] sm:$0xff] %v718
        %s731 = sand.u32 %s140, 1
        %s732 = scalar_lea.sflag [#allocation5], %s731
        %s733 = sand.u32 %s140, 1
        %s734 = smul.addr %s733, 96
        %s735 = scalar_lea.vmem [#allocation4], %s734
        // Predicated region
        $region37: #{tpu_custom_call.1} parent=35 // pred_check
          %p736 = pneg %p150
        $region38: #{tpu_custom_call.1} parent=35 // pred_check_branch
          %738 = sbr.rel (%p736) target = $region40
        $region39: #{tpu_custom_call.1} parent=35 // pred_region
          %s740 = ssub.s32 1536, 1536
          %741 = vsyncadd %s732, %s740
          %s742 = smul.addr %s22, 24
          %s743 = sadd.s32 %s23, %s742
          %s744 = smul.addr %s743, 128
          %s745 = scalar_lea.hbm %s4, %s744
          %s746 = sshll.u32 %s735, 4
          %s747 = int_to_ptr.vmem [resolvable:$true] %s746
          %752 = dma.vmem_to_hbm [thread:$0]  %s747, 1536, %s745, %s732, 128, 256, 8
        $region40: #{tpu_custom_call.1} parent=35 // pred_fallthru
          _
      $region36: #{tpu_custom_call.1} parent=5 // pred_fallthru
        _
      %p753 = scmp.le.s32.totalorder 2, %s13
      // Predicated region
      $region41: #{tpu_custom_call.1} parent=5 // pred_check
        %p754 = pneg %p753
      $region42: #{tpu_custom_call.1} parent=5 // pred_check_branch
        %756 = sbr.rel (%p754) target = $region44
      $region43: #{tpu_custom_call.1} parent=5 // pred_region
        %s757 = ssub.s32 %s13, 2
        // Predicated region
        $region45: #{tpu_custom_call.1} parent=43 // pred_check
          %p758 = pneg %p156
        $region46: #{tpu_custom_call.1} parent=43 // pred_check_branch
          %760 = sbr.rel (%p758) target = $region48
        $region47: #{tpu_custom_call.1} parent=43 // pred_region
          %s761 = sand.u32 %s141, 1
          %s762 = scalar_lea.sflag [#allocation5], %s761
          %s763 = sand.u32 %s141, 1
          %s764 = smul.addr %s763, 96
          %s765 = scalar_lea.vmem [#allocation4], %s764
          %766 = dma.done %s762, 1536
        $region48: #{tpu_custom_call.1} parent=43 // pred_fallthru
          _
      $region44: #{tpu_custom_call.1} parent=5 // pred_fallthru
        _
    $region6: #{tpu_custom_call.1} parent=1 // loop_footer
      %s17 = sadd.s32 1, %s13
    $region7: #{tpu_custom_call.1} parent=1 // loop_footer_branch
      %12 = sbr.rel target = $region3
    $region8: #{tpu_custom_call.1} parent=1 // loop_exit
      _
    %767 = vsyncpa [#allocation5], 1
    %s768 = scalar_lea.sflag [#allocation5], 1
    %769 = vsyncpa %s768, 1

</llo_original>
